<compile_context>
chip_gen: v7x
topology: tpu7x:2x2x1
jax: 0.10.0
libtpu: 0.0.40
codegen_flags: <defaults>
</compile_context>

<pallas_src>
import jax
import jax.numpy as jnp
from jax import lax
from jax.experimental import pallas as pl
from jax.experimental.pallas import tpu as pltpu

LANES = 128
TARGET_BYTES_PER_INPUT = 2 * 1024 * 1024   # ~2 MiB of HBM traffic per input per grid step
SLAB_ROWS = 512                            # inner reduction chunk; bounds traced live ranges


def _sublane_granule(dtype) -> int:
    """Minimum row-tile multiple for packed dtypes: 8 (32-bit), 16 (16-bit), 32 (8-bit)."""
    itemsize = jnp.dtype(dtype).itemsize
    return max(8, 8 * (4 // max(1, itemsize)))


def _num_tensorcores() -> int:
    """TensorCores per device: 2 on v7x-class chips, 1 on v5e/v6e (and anything unknown)."""
    try:
        kind = jax.devices()[0].device_kind.lower()
    except Exception:
        return 1
    return 2 if "v7" in kind else 1


def _make_sum_diff_kernel(rows, row_tile, slab_rows, blocks_per_core, any_ragged):
    """Kernel computing sum(p - t) over this core's contiguous block range into an
    (8,128) f32 partial (one per core)."""
    n_slabs = row_tile // slab_rows
    unroll = min(n_slabs, 8)

    def kernel(p_ref, t_ref, o_ref, acc_ref):
        rb = pl.program_id(1)  # row-block index within this core's range

        @pl.when(rb == 0)
        def _init():
            acc_ref[...] = jnp.zeros_like(acc_ref)

        def reduce_block(limit):
            # limit: None for a full block, else a scalar count of valid rows in the block.
            if limit is not None:
                # Loop-invariant slab-local iota, compared against a per-slab scalar limit.
                row_iota = lax.broadcasted_iota(jnp.int32, (slab_rows, LANES), 0)

            def slab(s, carry):
                start = pl.multiple_of(s * slab_rows, slab_rows)
                d = (p_ref[pl.ds(start, slab_rows), :].astype(jnp.float32)
                     - t_ref[pl.ds(start, slab_rows), :].astype(jnp.float32))
                if limit is not None:
                    # Mask BEFORE accumulation: over-read padded rows may hold garbage/NaN.
                    d = jnp.where(row_iota < (limit - start), d, 0.0)
                # VPU-only partial sums into the (8,128) vreg-shaped accumulator.
                acc_ref[...] += d.reshape(slab_rows // 8, 8, LANES).sum(axis=0)
                return carry

            lax.fori_loop(0, n_slabs, slab, 0, unroll=unroll)

        if any_ragged:
            gblk = pl.program_id(0) * blocks_per_core + rb
            valid = rows - gblk * row_tile   # may be <= 0 for clamped duplicated blocks

            @pl.when(valid >= row_tile)
            def _full():
                reduce_block(None)

            @pl.when(jnp.logical_and(valid > 0, valid < row_tile))
            def _ragged():
                reduce_block(valid)
            # valid <= 0 (duplicated clamped block): contributes nothing.
        else:
            reduce_block(None)

        @pl.when(rb == blocks_per_core - 1)
        def _finalize():
            # Lane-dense (1,8,128) store; the final cross-lane reduce happens in the wrapper.
            o_ref[...] = acc_ref[...].reshape(o_ref.shape)

    return kernel


@jax.jit
def _pallas_sum_diff(y_pred, y_true):
    """float32 sum(y_pred - y_true) computed with a tiled Pallas reduction."""
    n = y_pred.size
    flat_p = jnp.ravel(y_pred)            # row-major flatten; no wrapper dtype cast
    flat_t = jnp.ravel(y_true)

    granule = max(_sublane_granule(flat_p.dtype), _sublane_granule(flat_t.dtype))
    rows = n // LANES

    # Too small for even one legal tile: plain XLA sum (kernel dispatch would dominate).
    if rows < granule:
        return jnp.sum(flat_p.astype(jnp.float32) - flat_t.astype(jnp.float32))

    n_main = rows * LANES
    tail_sum = jnp.float32(0.0)
    if n_main != n:
        # <128 leftover elements that don't fill a lane row; summed in the wrapper.
        tail_sum = jnp.sum(flat_p[n_main:].astype(jnp.float32)
                           - flat_t[n_main:].astype(jnp.float32))
        flat_p = flat_p[:n_main]
        flat_t = flat_t[:n_main]

    p2d = flat_p.reshape(rows, LANES)
    t2d = flat_t.reshape(rows, LANES)

    # Row tile: ~2 MiB per input per grid step (dtype-scaled), a multiple of SLAB_ROWS so
    # the in-kernel reduction runs in bounded chunks.
    max_itemsize = max(jnp.dtype(flat_p.dtype).itemsize, jnp.dtype(flat_t.dtype).itemsize)
    target_rows = max(SLAB_ROWS, TARGET_BYTES_PER_INPUT // (LANES * max_itemsize))
    if rows >= SLAB_ROWS:
        row_tile = min(target_rows, (rows // SLAB_ROWS) * SLAB_ROWS)
        slab_rows = SLAB_ROWS
    else:
        row_tile = (rows // granule) * granule
        slab_rows = row_tile

    total_blocks = -(-rows // row_tile)

    # Generation-aware core split: contiguous per-core block ranges so at most one block
    # per call is ragged or duplicated.
    num_splits = max(1, min(_num_tensorcores(), total_blocks))
    blocks_per_core = -(-total_blocks // num_splits)
    any_ragged = (rows % row_tile != 0) or (num_splits * blocks_per_core != total_blocks)

    def in_index_map(c, rb):
        gblk = c * blocks_per_core + rb
        # Clamp so duplicated trailing blocks never DMA out of bounds; the in-kernel mask
        # zeroes their contribution (applied before accumulation).
        return (jnp.minimum(gblk, total_blocks - 1), 0)

    kernel = _make_sum_diff_kernel(rows, row_tile, slab_rows, blocks_per_core, any_ragged)

    if num_splits > 1:
        # Only core_parallel reliably shards a grid axis across TensorCores (v7x 2-TC).
        dim_sem = (pltpu.CORE_PARALLEL, pltpu.ARBITRARY)
    else:
        dim_sem = ("parallel", "arbitrary")

    partials = pl.pallas_call(
        kernel,
        out_shape=jax.ShapeDtypeStruct((num_splits, 8, LANES), jnp.float32),
        grid_spec=pltpu.PrefetchScalarGridSpec(
            num_scalar_prefetch=0,
            grid=(num_splits, blocks_per_core),
            in_specs=[
                pl.BlockSpec((row_tile, LANES), in_index_map),
                pl.BlockSpec((row_tile, LANES), in_index_map),
            ],
            out_specs=pl.BlockSpec((1, 8, LANES), lambda c, rb: (c, 0, 0)),
            scratch_shapes=[pltpu.VMEM((8, LANES), jnp.float32)],
        ),
        compiler_params=pltpu.CompilerParams(dimension_semantics=dim_sem),
    )(p2d, t2d)

    return jnp.sum(partials) + tail_sum


class CustomMetric:
    """JAX/Pallas port of the PyTorch CustomMetric module: stateful running
    sum(y_pred - y_true) divided by the running element count (state kept host-side,
    mirroring the nn.Module's Python attributes)."""

    def __init__(self, param1=1, param2=2, pallas_min_elements=16384):
        self.param1 = param1
        self.param2 = param2
        # Updates smaller than this use a plain XLA sum (kernel launch overhead dominates
        # for tiny tensors). Set to 0 to always use the Pallas kernel.
        self.pallas_min_elements = pallas_min_elements
        self.sum = jnp.float32(0.0)
        self.count = 0

    def __call__(self, y_pred, y_true):
        n = int(y_pred.size)
        if n < self.pallas_min_elements:
            s = jnp.sum(jnp.ravel(y_pred).astype(jnp.float32)
                        - jnp.ravel(y_true).astype(jnp.float32))
        else:
            s = _pallas_sum_diff(y_pred, y_true)
        self.sum = self.sum + s
        self.count += n
        return self.sum / jnp.float32(self.count)


if __name__ == "__main__":
    key = jax.random.PRNGKey(0)
    k1, k2, k3, k4, k5, k6, k7, k8 = jax.random.split(key, 8)

    # Primary example consistent with the module: (batch=2, channels=4, 16x16).
    y_pred = jax.random.normal(k1, (2, 4, 16, 16), dtype=jnp.float32)
    y_true = jax.random.normal(k2, (2, 4, 16, 16), dtype=jnp.float32)

    # pallas_min_elements=0 forces the Pallas kernel path even for this small demo.
    metric = CustomMetric(pallas_min_elements=0)
    result = jax.block_until_ready(metric(y_pred, y_true))
    ref = jnp.sum(y_pred - y_true) / y_pred.size
    assert jnp.allclose(result, ref, atol=1e-5, rtol=1e-5), (result, ref)

    # Second update on the same instance checks the running-mean (stateful) semantics.
    result2 = jax.block_until_ready(metric(y_true, y_pred))
    ref2 = (jnp.sum(y_pred - y_true) + jnp.sum(y_true - y_pred)) / (2 * y_pred.size)
    assert jnp.allclose(result2, ref2, atol=1e-4, rtol=1e-4), (result2, ref2)

    # Larger aligned case: 2048 rows -> single block, multi-slab unrolled reduction.
    a = jax.random.normal(k3, (4, 8, 64, 128), dtype=jnp.float32)
    b = jax.random.normal(k4, (4, 8, 64, 128), dtype=jnp.float32)
    got = jax.block_until_ready(_pallas_sum_diff(a, b))
    want = jnp.sum(a - b)
    assert jnp.allclose(got, want, atol=2e-1, rtol=1e-3), (got, want)

    # Multi-block ragged case: 5200 rows -> one full 4096-row block + one masked ragged block.
    c = jax.random.normal(k5, (2560, 260), dtype=jnp.float32)
    d = jax.random.normal(k6, (2560, 260), dtype=jnp.float32)
    got = jax.block_until_ready(_pallas_sum_diff(c, d))
    want = jnp.sum(c - d)
    assert jnp.allclose(got, want, atol=3.0, rtol=5e-3), (got, want)

    # Non-128-aligned element count: exercises the wrapper lane-tail path.
    e = jax.random.normal(k7, (3, 5, 9, 16), dtype=jnp.float32)
    f = jax.random.normal(k8, (3, 5, 9, 16), dtype=jnp.float32)
    got = jax.block_until_ready(_pallas_sum_diff(e, f))
    want = jnp.sum(e - f)
    assert jnp.allclose(got, want, atol=1e-3, rtol=1e-4), (got, want)

    # bf16 inputs: no wrapper cast (halves HBM traffic), dtype-scaled tile / 16-row granule.
    g = jax.random.normal(k3, (4, 8, 64, 128), dtype=jnp.float32).astype(jnp.bfloat16)
    h = jax.random.normal(k4, (4, 8, 64, 128), dtype=jnp.float32).astype(jnp.bfloat16)
    got = jax.block_until_ready(_pallas_sum_diff(g, h))
    want = jnp.sum(g.astype(jnp.float32) - h.astype(jnp.float32))
    assert jnp.allclose(got, want, atol=5e-1, rtol=1e-3), (got, want)

    print("KERNEL_OK")
</pallas_src>

<mosaic_0001>
module attributes {stable_mosaic.version = 11 : i64} {
  func.func @kernel(%arg0: i32, %arg1: i32, %arg2: memref<16x128xf32, #tpu.memory_space<vmem>>, %arg3: memref<16x128xf32, #tpu.memory_space<vmem>>, %arg4: memref<1x8x128xf32, #tpu.memory_space<vmem>>, %arg5: memref<8x128xf32, #tpu.memory_space<vmem>>) attributes {dimension_semantics = [#tpu.dimension_semantics<parallel>, #tpu.dimension_semantics<arbitrary>], iteration_bounds = array<i64: 1, 1>, scalar_prefetch = 0 : i64, scratch_operands = 1 : i64, tpu.core_type = #tpu.core_type<tc>, window_params = [{transform_indices = @transform_0, window_bounds = array<i64: 16, 128>}, {transform_indices = @transform_1, window_bounds = array<i64: 16, 128>}, {transform_indices = @transform_2, window_bounds = array<i64: 1, 8, 128>}]} {
    %c0_i32 = arith.constant 0 : i32
    %0 = arith.cmpi eq, %arg1, %c0_i32 : i32
    %1 = arith.extui %0 : i1 to i32
    %c0_i32_0 = arith.constant 0 : i32
    %2 = arith.cmpi ne, %1, %c0_i32_0 : i32
    scf.if %2 {
      %cst_9 = arith.constant 0.000000e+00 : f32
      %18 = vector.broadcast %cst_9 : f32 to vector<8x128xf32>
      %c0_10 = arith.constant 0 : index
      %c0_11 = arith.constant 0 : index
      %19 = vector.load %arg5[%c0_10, %c0_11] : memref<8x128xf32, #tpu.memory_space<vmem>>, vector<8x128xf32>
      tpu.vector_store %arg5[%c0_10, %c0_11], %18 {strides = array<i32>} : memref<8x128xf32, #tpu.memory_space<vmem>>, vector<8x128xf32>,
    } else {
    }
    %c0_i32_1 = arith.constant 0 : i32
    %c16_i32 = arith.constant 16 : i32
    %3 = arith.muli %c0_i32_1, %c16_i32 : i32
    %4 = tpu.assume_multiple %3, 16 : i32
    %5 = arith.index_cast %4 : i32 to index
    %c0 = arith.constant 0 : index
    %6 = vector.load %arg2[%5, %c0] : memref<16x128xf32, #tpu.memory_space<vmem>>, vector<16x128xf32>
    %7 = arith.index_cast %4 : i32 to index
    %c0_2 = arith.constant 0 : index
    %8 = vector.load %arg3[%7, %c0_2] : memref<16x128xf32, #tpu.memory_space<vmem>>, vector<16x128xf32>
    %9 = arith.subf %6, %8 : vector<16x128xf32>
    %c0_3 = arith.constant 0 : index
    %c0_4 = arith.constant 0 : index
    %10 = vector.load %arg5[%c0_3, %c0_4] : memref<8x128xf32, #tpu.memory_space<vmem>>, vector<8x128xf32>
    %11 = vector.shape_cast %9 : vector<16x128xf32> to vector<2x8x128xf32>
    %cst = arith.constant dense<0.000000e+00> : vector<8x128xf32>
    %12 = vector.multi_reduction <add>, %11, %cst [0] : vector<2x8x128xf32> to vector<8x128xf32>
    %13 = arith.addf %10, %12 : vector<8x128xf32>
    %c0_5 = arith.constant 0 : index
    %c0_6 = arith.constant 0 : index
    %14 = vector.load %arg5[%c0_5, %c0_6] : memref<8x128xf32, #tpu.memory_space<vmem>>, vector<8x128xf32>
    tpu.vector_store %arg5[%c0_5, %c0_6], %13 {strides = array<i32>} : memref<8x128xf32, #tpu.memory_space<vmem>>, vector<8x128xf32>,
    %c1_i32 = arith.constant 1 : i32
    %c0_i32_7 = arith.constant 0 : i32
    %15 = arith.cmpi eq, %arg1, %c0_i32_7 : i32
    %16 = arith.extui %15 : i1 to i32
    %c0_i32_8 = arith.constant 0 : i32
    %17 = arith.cmpi ne, %16, %c0_i32_8 : i32
    scf.if %17 {
      %c0_9 = arith.constant 0 : index
      %c0_10 = arith.constant 0 : index
      %18 = vector.load %arg5[%c0_9, %c0_10] : memref<8x128xf32, #tpu.memory_space<vmem>>, vector<8x128xf32>
      %19 = vector.shape_cast %18 : vector<8x128xf32> to vector<1x8x128xf32>
      %c0_11 = arith.constant 0 : index
      %c0_12 = arith.constant 0 : index
      %c0_13 = arith.constant 0 : index
      %20 = vector.load %arg4[%c0_11, %c0_12, %c0_13] : memref<1x8x128xf32, #tpu.memory_space<vmem>>, vector<1x8x128xf32>
      tpu.vector_store %arg4[%c0_11, %c0_12, %c0_13], %19 {strides = array<i32>} : memref<1x8x128xf32, #tpu.memory_space<vmem>>, vector<1x8x128xf32>,
    } else {
    }
    return
  }
  func.func @transform_0(%arg0: i32, %arg1: i32) -> (i32, i32) {
    %c1_i32 = arith.constant 1 : i32
    %0 = arith.muli %arg0, %c1_i32 : i32
    %1 = arith.addi %0, %arg1 : i32
    %c0_i32 = arith.constant 0 : i32
    %2 = arith.minsi %1, %c0_i32 : i32
    %c0_i32_0 = arith.constant 0 : i32
    %c0_i32_1 = arith.constant 0 : i32
    return %2, %c0_i32_0 : i32, i32
  }
  func.func @transform_1(%arg0: i32, %arg1: i32) -> (i32, i32) {
    %c1_i32 = arith.constant 1 : i32
    %0 = arith.muli %arg0, %c1_i32 : i32
    %1 = arith.addi %0, %arg1 : i32
    %c0_i32 = arith.constant 0 : i32
    %2 = arith.minsi %1, %c0_i32 : i32
    %c0_i32_0 = arith.constant 0 : i32
    %c0_i32_1 = arith.constant 0 : i32
    return %2, %c0_i32_0 : i32, i32
  }
  func.func @transform_2(%arg0: i32, %arg1: i32) -> (i32, i32, i32) {
    %c0_i32 = arith.constant 0 : i32
    %c0_i32_0 = arith.constant 0 : i32
    %c0_i32_1 = arith.constant 0 : i32
    return %arg0, %c0_i32, %c0_i32_0 : i32, i32, i32
  }
}

</mosaic_0001>

<llo_original>
// kernel: _pallas_sum_diff.1
$region0: #{_pallas_sum_diff.1}
  #allocation0 [shape = 'u32[]', space=smem, size = 0x4, offset = 0x4, fixed_abs, tag = 'smem constant byte address 0x4 - core index']
  #allocation1 [shape = 'u32[144,128]{1,0:T(1,128)}', space=vmem, size = 0x12000, scoped, tag = 'internal scratch']
  #allocation2 [shape = 'f32[8,128]{1,0:T(8,128)}', space=vmem, size = 0x1000, scoped, tag = 'scratch operand']
  %s0 = inlined_call_operand.vmem [shape: f32[16,128], index: 0, kind: input, shape index: {}]
  %s1 = inlined_call_operand.vmem [shape: f32[16,128], index: 1, kind: input, shape index: {}]
  %s2 = inlined_call_operand.vmem [shape: f32[1,8,128], index: 2, kind: output, shape index: {}]
  %s3 = sld [smem:[#allocation0]]
  $region26: #{_pallas_sum_diff.1} parent=0
    _
  %s5 = ssub.s32 1, %s3
  %s6 = scalar_select 0, %s5, %s3
  // Predicated region
  $region2: #{_pallas_sum_diff.1} parent=0 // pred_check
    _
  $region3: #{_pallas_sum_diff.1} parent=0 // pred_check_branch
    %8 = sbr.rel (0) target = $region5
  $region4: #{_pallas_sum_diff.1} parent=0 // pred_region
    %s9 = sadd.s32 0, 0
    %p10 = scmp.lt.s32.totalorder %s9, 0
    %s11 = scalar_select %p10, %s9, 0
    %s12 = smul.u32 2, %s11
    %p13 = scmp.lt.s32.totalorder %s12, 1
    %s14 = scalar_select %p13, %s12, 1
    %s15 = smul.addr %s14, 8
    %s16 = scalar_lea.vmem %s0, %s15
    %s17 = sadd.s32 0, 0
    %p18 = scmp.lt.s32.totalorder %s17, 0
    %s19 = scalar_select %p18, %s17, 0
    %s20 = smul.u32 2, %s19
  $region5: #{_pallas_sum_diff.1} parent=0 // pred_fallthru
    _
  // Predicated region
  $region6: #{_pallas_sum_diff.1} parent=0 // pred_check
    _
  $region7: #{_pallas_sum_diff.1} parent=0 // pred_check_branch
    %22 = sbr.rel (0) target = $region9
  $region8: #{_pallas_sum_diff.1} parent=0 // pred_region
    %s23 = sadd.s32 0, 0
    %p24 = scmp.lt.s32.totalorder %s23, 0
    %s25 = scalar_select %p24, %s23, 0
    %s26 = smul.u32 2, %s25
    %p27 = scmp.lt.s32.totalorder %s26, 1
    %s28 = scalar_select %p27, %s26, 1
    %s29 = smul.addr %s28, 8
    %s30 = scalar_lea.vmem %s1, %s29
    %s31 = sadd.s32 0, 0
    %p32 = scmp.lt.s32.totalorder %s31, 0
    %s33 = scalar_select %p32, %s31, 0
    %s34 = smul.u32 2, %s33
  $region9: #{_pallas_sum_diff.1} parent=0 // pred_fallthru
    _
  %s35 = sadd.s32 0, 0
  %p36 = scmp.lt.s32.totalorder %s35, 0
  %s37 = scalar_select %p36, %s35, 0
  %s38 = smul.u32 2, %s37
  %p39 = scmp.lt.s32.totalorder %s38, 1
  %s40 = scalar_select %p39, %s38, 1
  %s41 = smul.addr %s40, 8
  %s42 = scalar_lea.vmem %s0, %s41
  %s43 = sadd.s32 0, 0
  %p44 = scmp.lt.s32.totalorder %s43, 0
  %s45 = scalar_select %p44, %s43, 0
  %s46 = smul.u32 2, %s45
  %p47 = scmp.lt.s32.totalorder %s46, 1
  %s48 = scalar_select %p47, %s46, 1
  %s49 = smul.addr %s48, 8
  %s50 = scalar_lea.vmem %s1, %s49
  %s51 = sadd.s32 0, 0
  %p52 = scmp.lt.s32.totalorder %s51, 0
  %s53 = scalar_select %p52, %s51, 0
  %s54 = smul.u32 2, %s53
  %p55 = scmp.lt.s32.totalorder %s54, 1
  %s56 = scalar_select %p55, %s54, 1
  %s57 = smul.addr %s56, 8
  %s58 = scalar_lea.vmem %s0, %s57
  %s59 = sadd.s32 0, 0
  %p60 = scmp.lt.s32.totalorder %s59, 0
  %s61 = scalar_select %p60, %s59, 0
  %s62 = smul.u32 2, %s61
  %s63 = sadd.s32 0, 0
  %p64 = scmp.lt.s32.totalorder %s63, 0
  %s65 = scalar_select %p64, %s63, 0
  %s66 = smul.u32 2, %s65
  %p67 = scmp.lt.s32.totalorder %s66, 1
  %s68 = scalar_select %p67, %s66, 1
  %s69 = smul.addr %s68, 8
  %s70 = scalar_lea.vmem %s1, %s69
  %s71 = sadd.s32 0, 0
  %p72 = scmp.lt.s32.totalorder %s71, 0
  %s73 = scalar_select %p72, %s71, 0
  %s74 = smul.u32 2, %s73
  %p75 = scmp.eq.s32.totalorder 0, 0
  // Predicated region
  $region10: #{_pallas_sum_diff.1} parent=0 // pred_check
    %p76 = pneg %p75
  $region11: #{_pallas_sum_diff.1} parent=0 // pred_check_branch
    %78 = sbr.rel (%p76) target = $region13
  $region12: #{_pallas_sum_diff.1} parent=0 // pred_region
    %79 = vst [vmem:[#allocation2] sm:$0xff] 0.0
  $region13: #{_pallas_sum_diff.1} parent=0 // pred_fallthru
    _
  %v80 = vld [vmem:[%s58] sm:$0xff]
  %v81 = vld [vmem:[%s58 + $0x8] sm:$0xff]
  %v82 = vld [vmem:[%s70] sm:$0xff]
  %v83 = vld [vmem:[%s70 + $0x8] sm:$0xff]
  %v84 = vsub.f32 %v80, %v82
  %v85 = vsub.f32 %v81, %v83
  %v86 = vld [vmem:[#allocation2] sm:$0xff]
  %v87 = vadd.f32 %v84, %v85
  %v88 = vadd.f32 %v86, %v87
  %89 = vst [vmem:[#allocation2] sm:$0xff] %v88
  // Predicated region
  $region14: #{_pallas_sum_diff.1} parent=0 // pred_check
    %p90 = pneg %p75
  $region15: #{_pallas_sum_diff.1} parent=0 // pred_check_branch
    %92 = sbr.rel (%p90) target = $region17
  $region16: #{_pallas_sum_diff.1} parent=0 // pred_region
    %v93 = vld [vmem:[#allocation2] sm:$0xff]
    %94 = vst [vmem:[%s2] sm:$0xff] %v93
  $region17: #{_pallas_sum_diff.1} parent=0 // pred_fallthru
    _
  // Predicated region
  $region18: #{_pallas_sum_diff.1} parent=0 // pred_check
    _
  $region19: #{_pallas_sum_diff.1} parent=0 // pred_check_branch
    %96 = sbr.rel (0) target = $region21
  $region20: #{_pallas_sum_diff.1} parent=0 // pred_region
    _
  $region21: #{_pallas_sum_diff.1} parent=0 // pred_fallthru
    _
  // Predicated region
  $region22: #{_pallas_sum_diff.1} parent=0 // pred_check
    _
  $region23: #{_pallas_sum_diff.1} parent=0 // pred_check_branch
    %98 = sbr.rel (0) target = $region25
  $region24: #{_pallas_sum_diff.1} parent=0 // pred_region
    _
  $region25: #{_pallas_sum_diff.1} parent=0 // pred_fallthru
    _

</llo_original>
